<compile_context>
chip_gen: v7x
topology: tpu7x:2x2x1
jax: 0.10.0
libtpu: 0.0.40
codegen_flags: <defaults>
</compile_context>

<pallas_src>
import jax
import jax.numpy as jnp
from jax.experimental import pallas as pl
from jax.experimental.pallas import tpu as pltpu


def dqn_kernel(x_ref, w1_ref, b1_ref, w2_ref, b2_ref, o_ref):
    # Optional in-kernel cast to the (possibly bf16) weight dtype; no-op for f32.
    x = x_ref[...].astype(w1_ref.dtype)
    # fc1: MXU matmul with f32 accumulation; bias + ReLU in f32 on the VPU.
    h = jnp.dot(x, w1_ref[...], preferred_element_type=jnp.float32)
    h = jnp.maximum(h + b1_ref[...], 0.0)
    # fc2: cast hidden to the weight dtype for the second MXU pass, f32 accumulate.
    h = h.astype(w2_ref.dtype)
    out = jnp.dot(h, w2_ref[...], preferred_element_type=jnp.float32)
    o_ref[...] = (out + b2_ref[...]).astype(o_ref.dtype)


def _round_up(x, m):
    return ((x + m - 1) // m) * m


def dqn_forward(x, w1, b1, w2, b2, *, block_b=1024, use_bf16_matmul=False):
    """Fused DQN forward: relu(x @ w1 + b1) @ w2 + b2.

    x:  (B, in_dim) f32
    w1: (in_dim, 128) f32, b1: (1, 128) f32
    w2: (128, out_dim) f32, b2: (1, out_dim) f32
    Returns (B, out_dim) f32.
    """
    B, in_dim = x.shape
    hid = w1.shape[1]
    out_dim = w2.shape[1]

    # Batch tile: multiple of 8, at most block_b, and capped so the grid keeps
    # >= 2 steps whenever B > 8 (lets v7x's two TensorCores both get work via
    # the "parallel" grid axis; on v5e/v6e this just amortizes step overhead).
    tb = max(8, min(block_b, _round_up(pl.cdiv(B, 2), 8)))
    grid = (pl.cdiv(B, tb),)  # partial last block handled by Pallas masking

    # Optional bf16 MXU path: only the tiny resident weights are converted in
    # the wrapper; activations stream as f32 and are cast inside the kernel.
    if use_bf16_matmul:
        w1 = w1.astype(jnp.bfloat16)
        w2 = w2.astype(jnp.bfloat16)

    w_elem = 2 if use_bf16_matmul else 4
    cost = pl.CostEstimate(
        flops=2 * B * (in_dim * hid + hid * out_dim),
        transcendentals=0,
        bytes_accessed=(
            B * in_dim * 4                            # streamed activations in (f32)
            + B * out_dim * 4                         # output (f32)
            + (in_dim * hid + hid * out_dim) * w_elem  # resident weights
            + (hid + out_dim) * 4                     # biases
        ),
    )

    vmem = pltpu.MemorySpace.VMEM
    out = pl.pallas_call(
        dqn_kernel,
        out_shape=jax.ShapeDtypeStruct((B, out_dim), jnp.float32),
        grid=grid,
        in_specs=[
            pl.BlockSpec((tb, in_dim), lambda i: (i, 0), memory_space=vmem),
            pl.BlockSpec((in_dim, hid), lambda i: (0, 0), memory_space=vmem),
            pl.BlockSpec((1, hid), lambda i: (0, 0), memory_space=vmem),
            pl.BlockSpec((hid, out_dim), lambda i: (0, 0), memory_space=vmem),
            pl.BlockSpec((1, out_dim), lambda i: (0, 0), memory_space=vmem),
        ],
        out_specs=pl.BlockSpec((tb, out_dim), lambda i: (i, 0), memory_space=vmem),
        compiler_params=pltpu.CompilerParams(
            dimension_semantics=("parallel",),  # v7x: shard batch over 2 TCs
        ),
        cost_estimate=cost,
    )(x, w1, b1, w2, b2)
    return out


def init_params(key, input_dim, hidden_dim, output_dim):
    # Deterministic init mimicking nn.Linear's U(-1/sqrt(fan_in), 1/sqrt(fan_in)).
    k1, k2, k3, k4 = jax.random.split(key, 4)
    lim1 = 1.0 / jnp.sqrt(jnp.float32(input_dim))
    lim2 = 1.0 / jnp.sqrt(jnp.float32(hidden_dim))
    w1 = jax.random.uniform(k1, (input_dim, hidden_dim), jnp.float32, -lim1, lim1)
    b1 = jax.random.uniform(k2, (1, hidden_dim), jnp.float32, -lim1, lim1)
    w2 = jax.random.uniform(k3, (hidden_dim, output_dim), jnp.float32, -lim2, lim2)
    b2 = jax.random.uniform(k4, (1, output_dim), jnp.float32, -lim2, lim2)
    return w1, b1, w2, b2


# TODO(synk): for action selection / TD-target training steps, fuse the argmax /
# gather over actions into this kernel so the (B, out_dim) Q-values never
# round-trip HBM.

if __name__ == "__main__":
    input_dim, hidden_dim, output_dim = 32, 128, 8
    batch = 200  # not tile-aligned: exercises the cdiv grid + masked partial block

    key = jax.random.PRNGKey(0)
    k_x, k_p = jax.random.split(key)
    x = jax.random.normal(k_x, (batch, input_dim), jnp.float32)
    w1, b1, w2, b2 = init_params(k_p, input_dim, hidden_dim, output_dim)

    # Reference (plain JAX, f32).
    ref = jnp.maximum(x @ w1 + b1, 0.0) @ w2 + b2

    # f32 path (exact forward semantics of the PyTorch module).
    out_f32 = jax.block_until_ready(dqn_forward(x, w1, b1, w2, b2))
    assert out_f32.shape == (batch, output_dim)
    assert jnp.allclose(out_f32, ref, atol=1e-5, rtol=1e-5)

    # bf16-MXU path (weights bf16, in-kernel activation cast, f32 accumulation).
    out_bf16 = jax.block_until_ready(
        dqn_forward(x, w1, b1, w2, b2, use_bf16_matmul=True)
    )
    assert out_bf16.shape == (batch, output_dim)
    assert jnp.allclose(out_bf16, ref, atol=5e-2, rtol=5e-2)

    print("KERNEL_OK")
</pallas_src>

<mosaic_0001>
module attributes {stable_mosaic.version = 11 : i64} {
  func.func @dqn_kernel(%arg0: i32, %arg1: memref<104x32xf32, #tpu.memory_space<vmem>>, %arg2: memref<32x128xf32, #tpu.memory_space<vmem>>, %arg3: memref<1x128xf32, #tpu.memory_space<vmem>>, %arg4: memref<128x8xf32, #tpu.memory_space<vmem>>, %arg5: memref<1x8xf32, #tpu.memory_space<vmem>>, %arg6: memref<104x8xf32, #tpu.memory_space<vmem>>) attributes {dimension_semantics = [#tpu.dimension_semantics<parallel>], iteration_bounds = array<i64: 2>, scalar_prefetch = 0 : i64, scratch_operands = 0 : i64, tpu.core_type = #tpu.core_type<tc>, window_params = [{transform_indices = @transform_0, window_bounds = array<i64: 104, 32>}, {pipeline_mode = #tpu.pipeline_mode<synchronous>, transform_indices = @transform_1, window_bounds = array<i64: 32, 128>}, {pipeline_mode = #tpu.pipeline_mode<synchronous>, transform_indices = @transform_2, window_bounds = array<i64: 1, 128>}, {pipeline_mode = #tpu.pipeline_mode<synchronous>, transform_indices = @transform_3, window_bounds = array<i64: 128, 8>}, {pipeline_mode = #tpu.pipeline_mode<synchronous>, transform_indices = @transform_4, window_bounds = array<i64: 1, 8>}, {transform_indices = @transform_5, window_bounds = array<i64: 104, 8>}]} {
    %c0 = arith.constant 0 : index
    %c0_0 = arith.constant 0 : index
    %0 = vector.load %arg1[%c0, %c0_0] : memref<104x32xf32, #tpu.memory_space<vmem>>, vector<104x32xf32>
    %c0_1 = arith.constant 0 : index
    %c0_2 = arith.constant 0 : index
    %1 = vector.load %arg2[%c0_1, %c0_2] : memref<32x128xf32, #tpu.memory_space<vmem>>, vector<32x128xf32>
    %cst = arith.constant dense<0.000000e+00> : vector<104x128xf32>
    %2 = tpu.matmul %0, %1, %cst {dimension_numbers = #tpu.dot_dimension_numbers<[1], [0], [0], [1], [0, 0, 1, 1], [], []>} : vector<104x32xf32>, vector<32x128xf32>, vector<104x128xf32> -> vector<104x128xf32>
    %c0_3 = arith.constant 0 : index
    %c0_4 = arith.constant 0 : index
    %3 = vector.load %arg3[%c0_3, %c0_4] : memref<1x128xf32, #tpu.memory_space<vmem>>, vector<1x128xf32>
    %4 = vector.broadcast %3 : vector<1x128xf32> to vector<104x128xf32>
    %5 = arith.addf %2, %4 : vector<104x128xf32>
    %cst_5 = arith.constant 0.000000e+00 : f32
    %6 = vector.broadcast %cst_5 : f32 to vector<104x128xf32>
    %7 = arith.maximumf %5, %6 : vector<104x128xf32>
    %c0_6 = arith.constant 0 : index
    %c0_7 = arith.constant 0 : index
    %8 = vector.load %arg4[%c0_6, %c0_7] : memref<128x8xf32, #tpu.memory_space<vmem>>, vector<128x8xf32>
    %cst_8 = arith.constant dense<0.000000e+00> : vector<104x8xf32>
    %9 = tpu.matmul %7, %8, %cst_8 {dimension_numbers = #tpu.dot_dimension_numbers<[1], [0], [0], [1], [0, 0, 1, 1], [], []>} : vector<104x128xf32>, vector<128x8xf32>, vector<104x8xf32> -> vector<104x8xf32>
    %c0_9 = arith.constant 0 : index
    %c0_10 = arith.constant 0 : index
    %10 = vector.load %arg5[%c0_9, %c0_10] : memref<1x8xf32, #tpu.memory_space<vmem>>, vector<1x8xf32>
    %11 = vector.broadcast %10 : vector<1x8xf32> to vector<104x8xf32>
    %12 = arith.addf %9, %11 : vector<104x8xf32>
    %c0_11 = arith.constant 0 : index
    %c0_12 = arith.constant 0 : index
    %13 = vector.load %arg6[%c0_11, %c0_12] : memref<104x8xf32, #tpu.memory_space<vmem>>, vector<104x8xf32>
    tpu.vector_store %arg6[%c0_11, %c0_12], %12 {strides = array<i32>} : memref<104x8xf32, #tpu.memory_space<vmem>>, vector<104x8xf32>,
    return
  }
  func.func @transform_0(%arg0: i32) -> (i32, i32) {
    %c0_i32 = arith.constant 0 : i32
    %c0_i32_0 = arith.constant 0 : i32
    return %arg0, %c0_i32 : i32, i32
  }
  func.func @transform_1(%arg0: i32) -> (i32, i32) {
    %c0_i32 = arith.constant 0 : i32
    %c0_i32_0 = arith.constant 0 : i32
    %c0_i32_1 = arith.constant 0 : i32
    return %c0_i32, %c0_i32_0 : i32, i32
  }
  func.func @transform_2(%arg0: i32) -> (i32, i32) {
    %c0_i32 = arith.constant 0 : i32
    %c0_i32_0 = arith.constant 0 : i32
    %c0_i32_1 = arith.constant 0 : i32
    return %c0_i32, %c0_i32_0 : i32, i32
  }
  func.func @transform_3(%arg0: i32) -> (i32, i32) {
    %c0_i32 = arith.constant 0 : i32
    %c0_i32_0 = arith.constant 0 : i32
    %c0_i32_1 = arith.constant 0 : i32
    return %c0_i32, %c0_i32_0 : i32, i32
  }
  func.func @transform_4(%arg0: i32) -> (i32, i32) {
    %c0_i32 = arith.constant 0 : i32
    %c0_i32_0 = arith.constant 0 : i32
    %c0_i32_1 = arith.constant 0 : i32
    return %c0_i32, %c0_i32_0 : i32, i32
  }
  func.func @transform_5(%arg0: i32) -> (i32, i32) {
    %c0_i32 = arith.constant 0 : i32
    %c0_i32_0 = arith.constant 0 : i32
    return %arg0, %c0_i32 : i32, i32
  }
}

</mosaic_0001>

<llo_original>
// kernel: tpu_custom_call.1
$region0: #{tpu_custom_call.1}
  #allocation0 [shape = 'u32[]', space=smem, size = 0x4, offset = 0x4, fixed_abs, tag = 'smem constant byte address 0x4 - core index']
  #allocation1 [shape = 'u32[144,128]{1,0:T(1,128)}', space=vmem, size = 0x12000, scoped, tag = 'internal scratch']
  %s0 = inlined_call_operand.vmem [shape: f32[200,32], index: 0, kind: input, shape index: {}]
  %s1 = inlined_call_operand.vmem [shape: f32[32,128], index: 1, kind: input, shape index: {}]
  %s2 = inlined_call_operand.vmem [shape: f32[1,128], index: 2, kind: input, shape index: {}]
  %s3 = inlined_call_operand.vmem [shape: f32[128,8], index: 3, kind: input, shape index: {}]
  %s4 = inlined_call_operand.vmem [shape: f32[1,8], index: 4, kind: input, shape index: {}]
  %s5 = inlined_call_operand.vmem [shape: f32[200,8], index: 5, kind: output, shape index: {}]
  %s6 = sld [smem:[#allocation0]]
  $region101: #{tpu_custom_call.1} parent=0
    _
  %s8 = ssub.s32 1, %s6
  %s9 = scalar_select 0, %s8, %s6
  $region1: #{tpu_custom_call.1} parent=0
    #allocation2 [shape = 'u8[106496]{0}', space=vmem, size = 0x1a000, scoped, tag = 'output window, operand 0']
    loop: start=0, step=1, limit=4
    $region2: #{tpu_custom_call.1} parent=1 // loop_pre_header
      _
    $region3: #{tpu_custom_call.1} parent=1 // loop_header
      %s11 = sphi 0, %s15
      %p12 = scmp.ge.s32.totalorder %s11, 4
      %s21 = sphi 0, %s23
      %s24 = sphi 0, %s21
      %s25 = sphi 0, %s24
      %s41 = sphi 0, %s25
      %s45 = sphi 0, %s45
      %s47 = sphi 0, %s45
      %s48 = sphi 0, %s47
      %s62 = sphi 0, %s48
      %s66 = sphi 0, %s66
      %s68 = sphi 0, %s66
      %s69 = sphi 0, %s68
      %s83 = sphi 0, %s69
      %s87 = sphi 0, %s87
      %s89 = sphi 0, %s87
      %s90 = sphi 0, %s89
      %s104 = sphi 0, %s90
      %s108 = sphi 0, %s108
      %s110 = sphi 0, %s108
      %s111 = sphi 0, %s110
      %s125 = sphi 0, %s111
      %s131 = sphi 0, %s133
      %s134 = sphi 0, %s131
      %s135 = sphi 0, %s134
      %s151 = sphi 0, %s135
    $region4: #{tpu_custom_call.1} parent=1 // loop_header_branch
      %14 = sbr.rel (%p12) target = $region8
    $region5: #{tpu_custom_call.1} parent=1 // loop_body
      %s16 = ssub.s32 %s11, 1
      %s17 = ssub.s32 %s11, 2
      %s18 = sadd.s32 %s11, 1
      %s19 = ssub.s32 %s11, %s18
      %p20 = scmp.eq.s32.totalorder %s19, 0
      %s22 = sadd.s32 %s21, 1
      %s23 = scalar_select %p20, %s21, %s22
      %p26 = pneg %p20
      %p27 = scmp.eq.s32.totalorder %s11, 1
      %p28 = por %p26, %p27
      %p29 = scmp.ne.s32.totalorder %s21, %s24
      %p30 = scmp.eq.s32.totalorder %s11, 0
      %p31 = por %p29, %p30
      %p32 = scmp.ne.s32.totalorder %s21, %s24
      %p33 = scmp.eq.s32.totalorder %s16, 1
      %p34 = por %p32, %p33
      %p35 = scmp.ne.s32.totalorder %s24, %s25
      %p36 = scmp.eq.s32.totalorder %s16, 0
      %p37 = por %p35, %p36
      %p38 = scmp.ne.s32.totalorder %s24, %s25
      %p39 = scmp.eq.s32.totalorder %s17, 1
      %p40 = por %p38, %p39
      %p42 = scmp.ne.s32.totalorder %s25, %s41
      %p43 = scmp.eq.s32.totalorder %s17, 0
      %p44 = por %p42, %p43
      %s46 = sadd.s32 %s45, 1
      %p49 = scmp.eq.s32.totalorder %s11, 1
      %p50 = scmp.ne.s32.totalorder %s45, %s47
      %p51 = scmp.eq.s32.totalorder %s11, 0
      %p52 = por %p50, %p51
      %p53 = scmp.ne.s32.totalorder %s45, %s47
      %p54 = scmp.eq.s32.totalorder %s16, 1
      %p55 = por %p53, %p54
      %p56 = scmp.ne.s32.totalorder %s47, %s48
      %p57 = scmp.eq.s32.totalorder %s16, 0
      %p58 = por %p56, %p57
      %p59 = scmp.ne.s32.totalorder %s47, %s48
      %p60 = scmp.eq.s32.totalorder %s17, 1
      %p61 = por %p59, %p60
      %p63 = scmp.ne.s32.totalorder %s48, %s62
      %p64 = scmp.eq.s32.totalorder %s17, 0
      %p65 = por %p63, %p64
      %s67 = sadd.s32 %s66, 1
      %p70 = scmp.eq.s32.totalorder %s11, 1
      %p71 = scmp.ne.s32.totalorder %s66, %s68
      %p72 = scmp.eq.s32.totalorder %s11, 0
      %p73 = por %p71, %p72
      %p74 = scmp.ne.s32.totalorder %s66, %s68
      %p75 = scmp.eq.s32.totalorder %s16, 1
      %p76 = por %p74, %p75
      %p77 = scmp.ne.s32.totalorder %s68, %s69
      %p78 = scmp.eq.s32.totalorder %s16, 0
      %p79 = por %p77, %p78
      %p80 = scmp.ne.s32.totalorder %s68, %s69
      %p81 = scmp.eq.s32.totalorder %s17, 1
      %p82 = por %p80, %p81
      %p84 = scmp.ne.s32.totalorder %s69, %s83
      %p85 = scmp.eq.s32.totalorder %s17, 0
      %p86 = por %p84, %p85
      %s88 = sadd.s32 %s87, 1
      %p91 = scmp.eq.s32.totalorder %s11, 1
      %p92 = scmp.ne.s32.totalorder %s87, %s89
      %p93 = scmp.eq.s32.totalorder %s11, 0
      %p94 = por %p92, %p93
      %p95 = scmp.ne.s32.totalorder %s87, %s89
      %p96 = scmp.eq.s32.totalorder %s16, 1
      %p97 = por %p95, %p96
      %p98 = scmp.ne.s32.totalorder %s89, %s90
      %p99 = scmp.eq.s32.totalorder %s16, 0
      %p100 = por %p98, %p99
      %p101 = scmp.ne.s32.totalorder %s89, %s90
      %p102 = scmp.eq.s32.totalorder %s17, 1
      %p103 = por %p101, %p102
      %p105 = scmp.ne.s32.totalorder %s90, %s104
      %p106 = scmp.eq.s32.totalorder %s17, 0
      %p107 = por %p105, %p106
      %s109 = sadd.s32 %s108, 1
      %p112 = scmp.eq.s32.totalorder %s11, 1
      %p113 = scmp.ne.s32.totalorder %s108, %s110
      %p114 = scmp.eq.s32.totalorder %s11, 0
      %p115 = por %p113, %p114
      %p116 = scmp.ne.s32.totalorder %s108, %s110
      %p117 = scmp.eq.s32.totalorder %s16, 1
      %p118 = por %p116, %p117
      %p119 = scmp.ne.s32.totalorder %s110, %s111
      %p120 = scmp.eq.s32.totalorder %s16, 0
      %p121 = por %p119, %p120
      %p122 = scmp.ne.s32.totalorder %s110, %s111
      %p123 = scmp.eq.s32.totalorder %s17, 1
      %p124 = por %p122, %p123
      %p126 = scmp.ne.s32.totalorder %s111, %s125
      %p127 = scmp.eq.s32.totalorder %s17, 0
      %p128 = por %p126, %p127
      %s129 = ssub.s32 %s11, %s18
      %p130 = scmp.eq.s32.totalorder %s129, 0
      %s132 = sadd.s32 %s131, 1
      %s133 = scalar_select %p130, %s131, %s132
      %p136 = pneg %p130
      %p137 = scmp.eq.s32.totalorder %s11, 1
      %p138 = por %p136, %p137
      %p139 = scmp.ne.s32.totalorder %s131, %s134
      %p140 = scmp.eq.s32.totalorder %s11, 0
      %p141 = por %p139, %p140
      %p142 = scmp.ne.s32.totalorder %s131, %s134
      %p143 = scmp.eq.s32.totalorder %s16, 1
      %p144 = por %p142, %p143
      %p145 = scmp.ne.s32.totalorder %s134, %s135
      %p146 = scmp.eq.s32.totalorder %s16, 0
      %p147 = por %p145, %p146
      %p148 = scmp.ne.s32.totalorder %s134, %s135
      %p149 = scmp.eq.s32.totalorder %s17, 1
      %p150 = por %p148, %p149
      %p152 = scmp.ne.s32.totalorder %s135, %s151
      %p153 = scmp.eq.s32.totalorder %s17, 0
      %p154 = por %p152, %p153
      %p155 = scmp.le.s32.totalorder 1, %s11
      %p156 = scmp.lt.s32.totalorder %s11, 3
      %p157 = pnand %p155, %p156
      %p158 = pneg %p157
      // Predicated region
      $region9: #{tpu_custom_call.1} parent=5 // pred_check
        _
      $region10: #{tpu_custom_call.1} parent=5 // pred_check_branch
        %160 = sbr.rel (%p157) target = $region12
      $region11: #{tpu_custom_call.1} parent=5 // pred_region
        %s161 = ssub.s32 %s11, 1
        // Predicated region
        $region13: #{tpu_custom_call.1} parent=11 // pred_check
          %p162 = pneg %p58
        $region14: #{tpu_custom_call.1} parent=11 // pred_check_branch
          %164 = sbr.rel (%p162) target = $region16
        $region15: #{tpu_custom_call.1} parent=11 // pred_region
          _
        $region16: #{tpu_custom_call.1} parent=11 // pred_fallthru
          _
        // Predicated region
        $region17: #{tpu_custom_call.1} parent=11 // pred_check
          %p165 = pneg %p79
        $region18: #{tpu_custom_call.1} parent=11 // pred_check_branch
          %167 = sbr.rel (%p165) target = $region20
        $region19: #{tpu_custom_call.1} parent=11 // pred_region
          _
        $region20: #{tpu_custom_call.1} parent=11 // pred_fallthru
          _
        // Predicated region
        $region21: #{tpu_custom_call.1} parent=11 // pred_check
          %p168 = pneg %p100
        $region22: #{tpu_custom_call.1} parent=11 // pred_check_branch
          %170 = sbr.rel (%p168) target = $region24
        $region23: #{tpu_custom_call.1} parent=11 // pred_region
          _
        $region24: #{tpu_custom_call.1} parent=11 // pred_fallthru
          _
        // Predicated region
        $region25: #{tpu_custom_call.1} parent=11 // pred_check
          %p171 = pneg %p121
        $region26: #{tpu_custom_call.1} parent=11 // pred_check_branch
          %173 = sbr.rel (%p171) target = $region28
        $region27: #{tpu_custom_call.1} parent=11 // pred_region
          _
        $region28: #{tpu_custom_call.1} parent=11 // pred_fallthru
          _
      $region12: #{tpu_custom_call.1} parent=5 // pred_fallthru
        _
      %p174 = scmp.lt.s32.totalorder %s11, 2
      // Predicated region
      $region29: #{tpu_custom_call.1} parent=5 // pred_check
        %p175 = pneg %p174
      $region30: #{tpu_custom_call.1} parent=5 // pred_check_branch
        %177 = sbr.rel (%p175) target = $region32
      $region31: #{tpu_custom_call.1} parent=5 // pred_region
        // Predicated region
        $region33: #{tpu_custom_call.1} parent=31 // pred_check
          %p178 = pneg %p31
        $region34: #{tpu_custom_call.1} parent=31 // pred_check_branch
          %180 = sbr.rel (%p178) target = $region36
        $region35: #{tpu_custom_call.1} parent=31 // pred_region
          %s181 = smul.u32 13, %s11
          %s182 = ssub.s32 25, %s181
          %p183 = scmp.lt.s32.totalorder %s182, 13
          %s184 = scalar_select %p183, %s182, 13
          %s185 = smul.u32 128, %s184
          %p186 = scmp.lt.s32.totalorder %s181, 24
          %s187 = scalar_select %p186, %s181, 24
          %s188 = smul.addr %s187, 8
          %s189 = scalar_lea.vmem %s0, %s188
          %s190 = smul.u32 13, %s11
          %s191 = ssub.s32 25, %s190
          %p192 = scmp.lt.s32.totalorder %s191, 13
          %s193 = scalar_select %p192, %s191, 13
          %s194 = smul.u32 128, %s193
        $region36: #{tpu_custom_call.1} parent=31 // pred_fallthru
          _
      $region32: #{tpu_custom_call.1} parent=5 // pred_fallthru
        _
      %p195 = scmp.le.s32.totalorder 1, %s11
      %p196 = scmp.lt.s32.totalorder %s11, 3
      %p197 = pnand %p195, %p196
      %p198 = pneg %p197
      // Predicated region
      $region37: #{tpu_custom_call.1} parent=5 // pred_check
        _
      $region38: #{tpu_custom_call.1} parent=5 // pred_check_branch
        %200 = sbr.rel (%p197) target = $region40
      $region39: #{tpu_custom_call.1} parent=5 // pred_region
        %s201 = ssub.s32 %s11, 1
        %s202 = smul.u32 13, %s16
        %s203 = ssub.s32 25, %s202
        %p204 = scmp.lt.s32.totalorder %s203, 13
        %s205 = scalar_select %p204, %s203, 13
        %s206 = smul.u32 128, %s205
        %p207 = scmp.lt.s32.totalorder %s202, 24
        %s208 = scalar_select %p207, %s202, 24
        %s209 = smul.addr %s208, 8
        %s210 = scalar_lea.vmem %s0, %s209
        %p211 = pneg %p37
        %p212 = pneg %p34
        %p213 = pneg %p58
        %p214 = pneg %p55
        %p215 = pneg %p79
        %p216 = pneg %p76
        %p217 = pneg %p100
        %p218 = pneg %p97
        %p219 = pneg %p121
        %p220 = pneg %p118
        %p221 = pneg %p147
        %p222 = pneg %p144
        %s223 = sand.u32 %s134, 1
        %s224 = sand.u32 %s134, 1
        %s225 = smul.addr %s224, 104
        %s226 = scalar_lea.vmem [#allocation2], %s225
        %s227 = smul.u32 13, %s16
        %s228 = ssub.s32 25, %s227
        %p229 = scmp.lt.s32.totalorder %s228, 13
        %s230 = scalar_select %p229, %s228, 13
        %s231 = smul.u32 128, %s230
        %p232 = scmp.lt.s32.totalorder %s227, 24
        %s233 = scalar_select %p232, %s227, 24
        %s234 = smul.addr %s233, 8
        %s235 = scalar_lea.vmem %s0, %s234
        %s236 = smul.u32 13, %s16
        %s237 = ssub.s32 25, %s236
        %p238 = scmp.lt.s32.totalorder %s237, 13
        %s239 = scalar_select %p238, %s237, 13
        %s240 = smul.u32 128, %s239
        %s241 = smul.u32 13, %s16
        %s242 = ssub.s32 25, %s241
        %p243 = scmp.lt.s32.totalorder %s242, 13
        %s244 = scalar_select %p243, %s242, 13
        %s245 = smul.u32 128, %s244
        %v246 = vld [vmem:[%s235] sm:$0xff]
        %v247 = vld [vmem:[%s235 + $0x8] sm:$0xff]
        %v248 = vld [vmem:[%s235 + $0x10] sm:$0xff]
        %v249 = vld [vmem:[%s235 + $0x18] sm:$0xff]
        %v250 = vld [vmem:[%s235 + $0x20] sm:$0xff]
        %v251 = vld [vmem:[%s235 + $0x28] sm:$0xff]
        %v252 = vld [vmem:[%s235 + $0x30] sm:$0xff]
        %v253 = vld [vmem:[%s235 + $0x38] sm:$0xff]
        %v254 = vld [vmem:[%s235 + $0x40] sm:$0xff]
        %v255 = vld [vmem:[%s235 + $0x48] sm:$0xff]
        %v256 = vld [vmem:[%s235 + $0x50] sm:$0xff]
        %v257 = vld [vmem:[%s235 + $0x58] sm:$0xff]
        %v258 = vld [vmem:[%s235 + $0x60] sm:$0xff]
        %v259 = vld [vmem:[%s1] sm:$0xff]
        %v260 = vld [vmem:[%s1 + $0x8] sm:$0xff]
        %v261 = vld [vmem:[%s1 + $0x10] sm:$0xff]
        %v262 = vld [vmem:[%s1 + $0x18] sm:$0xff]
        %v263 = vld [vmem:[%s2] sm:$0x1]
        %v265 = vlaneseq
        %v266 = vshrl.u32 %v265, 7
        %v267 = vsub.s32 0, %v266
        %v268 = vrot.slane %v263, %v267
        %vm270 = vcmask 261120
        %v272 = vsel %vm270, %v246, 0
        %v275 = vsel %vm270, %v247, 0
        %v278 = vsel %vm270, %v248, 0
        %v281 = vsel %vm270, %v249, 0
        %v284 = vsel %vm270, %v250, 0
        %v287 = vsel %vm270, %v251, 0
        %v290 = vsel %vm270, %v252, 0
        %v293 = vsel %vm270, %v253, 0
        %v296 = vsel %vm270, %v254, 0
        %v299 = vsel %vm270, %v255, 0
        %v302 = vsel %vm270, %v256, 0
        %v305 = vsel %vm270, %v257, 0
        %v308 = vsel %vm270, %v258, 0
        %310 = vmatprep.subr.mxu0 0.0
        %311 = vmatpush1.msra.mxu0 %v259
        %312 = vmatprep.subr.mxu0 0.0
        %313 = vmatpush1.msra.mxu0 %v260
        %314 = vmatprep.subr.mxu0 0.0
        %315 = vmatpush1.msra.mxu0 %v261
        %316 = vmatprep.subr.mxu0 0.0
        %317 = vmatpush1.msra.mxu0 %v262
        %318 = vmatprep.subr.mxu0 0.0
        %319 = vmatpush1.msra.mxu0 0.0
        %320 = vmatprep.subr.mxu0 0.0
        %321 = vmatpush1.msra.mxu0 0.0
        %322 = vmatprep.subr.mxu0 0.0
        %323 = vmatpush1.msra.mxu0 0.0
        %324 = vmatprep.subr.mxu0 0.0
        %325 = vmatpush1.msra.mxu0 0.0
        %326 = vmatprep.subr.mxu0 0.0
        %327 = vmatpush1.msra.mxu0 0.0
        %328 = vmatprep.subr.mxu0 0.0
        %329 = vmatpush1.msra.mxu0 0.0
        %330 = vmatprep.subr.mxu0 0.0
        %331 = vmatpush1.msra.mxu0 0.0
        %332 = vmatprep.subr.mxu0 0.0
        %333 = vmatpush1.msra.mxu0 0.0
        %334 = vmatprep.subr.mxu0 0.0
        %335 = vmatpush1.msra.mxu0 0.0
        %336 = vmatprep.subr.mxu0 0.0
        %337 = vmatpush1.msra.mxu0 0.0
        %338 = vmatprep.subr.mxu0 0.0
        %339 = vmatpush1.msra.mxu0 0.0
        %340 = vmatprep.subr.mxu0 0.0
        %341 = vmatpush1.msra.mxu0 0.0
        %342 = vmatprep.subr.mxu0 0.0
        %343 = vmatpush1.msra.mxu0 0.0
        %344 = vmatprep.subr.mxu0 0.0
        %345 = vmatpush1.msra.mxu0 0.0
        %346 = vmatprep.subr.mxu0 0.0
        %347 = vmatpush1.msra.mxu0 0.0
        %348 = vmatprep.subr.mxu0 0.0
        %349 = vmatpush1.msra.mxu0 0.0
        %350 = vmatprep.subr.mxu0 0.0
        %351 = vmatpush1.msra.mxu0 0.0
        %352 = vmatprep.subr.mxu0 0.0
        %353 = vmatpush1.msra.mxu0 0.0
        %354 = vmatprep.subr.mxu0 0.0
        %355 = vmatpush1.msra.mxu0 0.0
        %356 = vmatprep.subr.mxu0 0.0
        %357 = vmatpush1.msra.mxu0 0.0
        %358 = vmatprep.subr.mxu0 0.0
        %359 = vmatpush1.msra.mxu0 0.0
        %360 = vmatprep.subr.mxu0 0.0
        %361 = vmatpush1.msra.mxu0 0.0
        %362 = vmatprep.subr.mxu0 0.0
        %363 = vmatpush1.msra.mxu0 0.0
        %364 = vmatprep.subr.mxu0 0.0
        %365 = vmatpush1.msra.mxu0 0.0
        %366 = vmatprep.subr.mxu0 0.0
        %367 = vmatpush1.msra.mxu0 0.0
        %368 = vmatprep.subr.mxu0 0.0
        %369 = vmatpush1.msra.mxu0 0.0
        %370 = vmatprep.subr.mxu0 0.0
        %371 = vmatpush1.msra.mxu0 0.0
        %372 = vmatprep.subr.mxu0 0.0
        %373 = vmatpush1.msra.mxu0 0.0
        %374 = vmatprep.mubr.f32.mxu0 0.0
        %375 = vmatmul.mubr.f32.gmra.mrb[0].mxu0 %v272
        %v376 = vpop.f32.mrb[0].mxu0
        %v377 = vadd.f32 %v268, %v376
        %v378 = vpop.f32.mrb[0].mxu0
        %379 = vmatprep.mubr.f32.mxu0 0.0
        %380 = vmatmul.mubr.f32.gmra.mrb[0].mxu0 %v275
        %v381 = vpop.f32.mrb[0].mxu0
        %v382 = vadd.f32 %v268, %v381
        %v383 = vpop.f32.mrb[0].mxu0
        %384 = vmatprep.mubr.f32.mxu0 0.0
        %385 = vmatmul.mubr.f32.gmra.mrb[0].mxu0 %v278
        %v386 = vpop.f32.mrb[0].mxu0
        %v387 = vadd.f32 %v268, %v386
        %v388 = vpop.f32.mrb[0].mxu0
        %389 = vmatprep.mubr.f32.mxu0 0.0
        %390 = vmatmul.mubr.f32.gmra.mrb[0].mxu0 %v281
        %v391 = vpop.f32.mrb[0].mxu0
        %v392 = vadd.f32 %v268, %v391
        %v393 = vpop.f32.mrb[0].mxu0
        %394 = vmatprep.mubr.f32.mxu0 0.0
        %395 = vmatmul.mubr.f32.gmra.mrb[0].mxu0 %v284
        %v396 = vpop.f32.mrb[0].mxu0
        %v397 = vadd.f32 %v268, %v396
        %v398 = vpop.f32.mrb[0].mxu0
        %399 = vmatprep.mubr.f32.mxu0 0.0
        %400 = vmatmul.mubr.f32.gmra.mrb[0].mxu0 %v287
        %v401 = vpop.f32.mrb[0].mxu0
        %v402 = vadd.f32 %v268, %v401
        %v403 = vpop.f32.mrb[0].mxu0
        %404 = vmatprep.mubr.f32.mxu0 0.0
        %405 = vmatmul.mubr.f32.gmra.mrb[0].mxu0 %v290
        %v406 = vpop.f32.mrb[0].mxu0
        %v407 = vadd.f32 %v268, %v406
        %v408 = vpop.f32.mrb[0].mxu0
        %409 = vmatprep.mubr.f32.mxu0 0.0
        %410 = vmatmul.mubr.f32.gmra.mrb[0].mxu0 %v293
        %v411 = vpop.f32.mrb[0].mxu0
        %v412 = vadd.f32 %v268, %v411
        %v413 = vpop.f32.mrb[0].mxu0
        %414 = vmatprep.mubr.f32.mxu0 0.0
        %415 = vmatmul.mubr.f32.gmra.mrb[0].mxu0 %v296
        %v416 = vpop.f32.mrb[0].mxu0
        %v417 = vadd.f32 %v268, %v416
        %v418 = vpop.f32.mrb[0].mxu0
        %419 = vmatprep.mubr.f32.mxu0 0.0
        %420 = vmatmul.mubr.f32.gmra.mrb[0].mxu0 %v299
        %v421 = vpop.f32.mrb[0].mxu0
        %v422 = vadd.f32 %v268, %v421
        %v423 = vpop.f32.mrb[0].mxu0
        %424 = vmatprep.mubr.f32.mxu0 0.0
        %425 = vmatmul.mubr.f32.gmra.mrb[0].mxu0 %v302
        %v426 = vpop.f32.mrb[0].mxu0
        %v427 = vadd.f32 %v268, %v426
        %v428 = vpop.f32.mrb[0].mxu0
        %429 = vmatprep.mubr.f32.mxu0 0.0
        %430 = vmatmul.mubr.f32.gmra.mrb[0].mxu0 %v305
        %v431 = vpop.f32.mrb[0].mxu0
        %v432 = vadd.f32 %v268, %v431
        %v433 = vpop.f32.mrb[0].mxu0
        %434 = vmatprep.mubr.f32.mxu0 0.0
        %435 = vmatmul.mubr.f32.gmra.mrb[0].mxu0 %v308
        %v436 = vpop.f32.mrb[0].mxu0
        %v437 = vadd.f32 %v268, %v436
        %v438 = vpop.f32.mrb[0].mxu0
        %439 = vdwg.mxu0
        %v440 = vmax.f32 %v377, 0.0
        %v441 = vmax.f32 %v382, 0.0
        %v442 = vmax.f32 %v387, 0.0
        %v443 = vmax.f32 %v392, 0.0
        %v444 = vmax.f32 %v397, 0.0
        %v445 = vmax.f32 %v402, 0.0
        %v446 = vmax.f32 %v407, 0.0
        %v447 = vmax.f32 %v412, 0.0
        %v448 = vmax.f32 %v417, 0.0
        %v449 = vmax.f32 %v422, 0.0
        %v450 = vmax.f32 %v427, 0.0
        %v451 = vmax.f32 %v432, 0.0
        %v452 = vmax.f32 %v437, 0.0
        %v453 = vld [vmem:[%s3] sm:$0xff]
        %v454 = vld [vmem:[%s3 + $0x8] sm:$0xff]
        %v455 = vld [vmem:[%s3 + $0x10] sm:$0xff]
        %v456 = vld [vmem:[%s3 + $0x18] sm:$0xff]
        %v457 = vld [vmem:[%s3 + $0x20] sm:$0xff]
        %v458 = vld [vmem:[%s3 + $0x28] sm:$0xff]
        %v459 = vld [vmem:[%s3 + $0x30] sm:$0xff]
        %v460 = vld [vmem:[%s3 + $0x38] sm:$0xff]
        %v461 = vld [vmem:[%s3 + $0x40] sm:$0xff]
        %v462 = vld [vmem:[%s3 + $0x48] sm:$0xff]
        %v463 = vld [vmem:[%s3 + $0x50] sm:$0xff]
        %v464 = vld [vmem:[%s3 + $0x58] sm:$0xff]
        %v465 = vld [vmem:[%s3 + $0x60] sm:$0xff]
        %v466 = vld [vmem:[%s3 + $0x68] sm:$0xff]
        %v467 = vld [vmem:[%s3 + $0x70] sm:$0xff]
        %v468 = vld [vmem:[%s3 + $0x78] sm:$0xff]
        %v469 = vld [vmem:[%s4] sm:$0x1]
        %v471 = vlaneseq
        %v472 = vshrl.u32 %v471, 7
        %v473 = vsub.s32 0, %v472
        %v474 = vrot.slane %v469, %v473
        %476 = vmatprep.subr.mxu0 0.0
        %477 = vmatpush1.msra.mxu0 %v453
        %478 = vmatprep.subr.mxu0 0.0
        %479 = vmatpush1.msra.mxu0 %v454
        %480 = vmatprep.subr.mxu0 0.0
        %481 = vmatpush1.msra.mxu0 %v455
        %482 = vmatprep.subr.mxu0 0.0
        %483 = vmatpush1.msra.mxu0 %v456
        %484 = vmatprep.subr.mxu0 0.0
        %485 = vmatpush1.msra.mxu0 %v457
        %486 = vmatprep.subr.mxu0 0.0
        %487 = vmatpush1.msra.mxu0 %v458
        %488 = vmatprep.subr.mxu0 0.0
        %489 = vmatpush1.msra.mxu0 %v459
        %490 = vmatprep.subr.mxu0 0.0
        %491 = vmatpush1.msra.mxu0 %v460
        %492 = vmatprep.subr.mxu0 0.0
        %493 = vmatpush1.msra.mxu0 %v461
        %494 = vmatprep.subr.mxu0 0.0
        %495 = vmatpush1.msra.mxu0 %v462
        %496 = vmatprep.subr.mxu0 0.0
        %497 = vmatpush1.msra.mxu0 %v463
        %498 = vmatprep.subr.mxu0 0.0
        %499 = vmatpush1.msra.mxu0 %v464
        %500 = vmatprep.subr.mxu0 0.0
        %501 = vmatpush1.msra.mxu0 %v465
        %502 = vmatprep.subr.mxu0 0.0
        %503 = vmatpush1.msra.mxu0 %v466
        %504 = vmatprep.subr.mxu0 0.0
        %505 = vmatpush1.msra.mxu0 %v467
        %506 = vmatprep.subr.mxu0 0.0
        %507 = vmatpush1.msra.mxu0 %v468
        %508 = vmatprep.subr.mxu0 0.0
        %509 = vmatpush1.msra.mxu0 0.0
        %510 = vmatprep.subr.mxu0 0.0
        %511 = vmatpush1.msra.mxu0 0.0
        %512 = vmatprep.subr.mxu0 0.0
        %513 = vmatpush1.msra.mxu0 0.0
        %514 = vmatprep.subr.mxu0 0.0
        %515 = vmatpush1.msra.mxu0 0.0
        %516 = vmatprep.subr.mxu0 0.0
        %517 = vmatpush1.msra.mxu0 0.0
        %518 = vmatprep.subr.mxu0 0.0
        %519 = vmatpush1.msra.mxu0 0.0
        %520 = vmatprep.subr.mxu0 0.0
        %521 = vmatpush1.msra.mxu0 0.0
        %522 = vmatprep.subr.mxu0 0.0
        %523 = vmatpush1.msra.mxu0 0.0
        %524 = vmatprep.subr.mxu0 0.0
        %525 = vmatpush1.msra.mxu0 0.0
        %526 = vmatprep.subr.mxu0 0.0
        %527 = vmatpush1.msra.mxu0 0.0
        %528 = vmatprep.subr.mxu0 0.0
        %529 = vmatpush1.msra.mxu0 0.0
        %530 = vmatprep.subr.mxu0 0.0
        %531 = vmatpush1.msra.mxu0 0.0
        %532 = vmatprep.subr.mxu0 0.0
        %533 = vmatpush1.msra.mxu0 0.0
        %534 = vmatprep.subr.mxu0 0.0
        %535 = vmatpush1.msra.mxu0 0.0
        %536 = vmatprep.subr.mxu0 0.0
        %537 = vmatpush1.msra.mxu0 0.0
        %538 = vmatprep.subr.mxu0 0.0
        %539 = vmatpush1.msra.mxu0 0.0
        %540 = vmatprep.mubr.f32.mxu0 0.0
        %541 = vmatmul.mubr.f32.gmra.mrb[0].mxu0 %v440
        %v542 = vpop.f32.mrb[0].mxu0
        %v543 = vadd.f32 %v474, %v542
        %v544 = vpop.f32.mrb[0].mxu0
        %545 = vmatprep.mubr.f32.mxu0 0.0
        %546 = vmatmul.mubr.f32.gmra.mrb[0].mxu0 %v441
        %v547 = vpop.f32.mrb[0].mxu0
        %v548 = vadd.f32 %v474, %v547
        %v549 = vpop.f32.mrb[0].mxu0
        %550 = vmatprep.mubr.f32.mxu0 0.0
        %551 = vmatmul.mubr.f32.gmra.mrb[0].mxu0 %v442
        %v552 = vpop.f32.mrb[0].mxu0
        %v553 = vadd.f32 %v474, %v552
        %v554 = vpop.f32.mrb[0].mxu0
        %555 = vmatprep.mubr.f32.mxu0 0.0
        %556 = vmatmul.mubr.f32.gmra.mrb[0].mxu0 %v443
        %v557 = vpop.f32.mrb[0].mxu0
        %v558 = vadd.f32 %v474, %v557
        %v559 = vpop.f32.mrb[0].mxu0
        %560 = vmatprep.mubr.f32.mxu0 0.0
        %561 = vmatmul.mubr.f32.gmra.mrb[0].mxu0 %v444
        %v562 = vpop.f32.mrb[0].mxu0
        %v563 = vadd.f32 %v474, %v562
        %v564 = vpop.f32.mrb[0].mxu0
        %565 = vmatprep.mubr.f32.mxu0 0.0
        %566 = vmatmul.mubr.f32.gmra.mrb[0].mxu0 %v445
        %v567 = vpop.f32.mrb[0].mxu0
        %v568 = vadd.f32 %v474, %v567
        %v569 = vpop.f32.mrb[0].mxu0
        %570 = vmatprep.mubr.f32.mxu0 0.0
        %571 = vmatmul.mubr.f32.gmra.mrb[0].mxu0 %v446
        %v572 = vpop.f32.mrb[0].mxu0
        %v573 = vadd.f32 %v474, %v572
        %v574 = vpop.f32.mrb[0].mxu0
        %575 = vmatprep.mubr.f32.mxu0 0.0
        %576 = vmatmul.mubr.f32.gmra.mrb[0].mxu0 %v447
        %v577 = vpop.f32.mrb[0].mxu0
        %v578 = vadd.f32 %v474, %v577
        %v579 = vpop.f32.mrb[0].mxu0
        %580 = vmatprep.mubr.f32.mxu0 0.0
        %581 = vmatmul.mubr.f32.gmra.mrb[0].mxu0 %v448
        %v582 = vpop.f32.mrb[0].mxu0
        %v583 = vadd.f32 %v474, %v582
        %v584 = vpop.f32.mrb[0].mxu0
        %585 = vmatprep.mubr.f32.mxu0 0.0
        %586 = vmatmul.mubr.f32.gmra.mrb[0].mxu0 %v449
        %v587 = vpop.f32.mrb[0].mxu0
        %v588 = vadd.f32 %v474, %v587
        %v589 = vpop.f32.mrb[0].mxu0
        %590 = vmatprep.mubr.f32.mxu0 0.0
        %591 = vmatmul.mubr.f32.gmra.mrb[0].mxu0 %v450
        %v592 = vpop.f32.mrb[0].mxu0
        %v593 = vadd.f32 %v474, %v592
        %v594 = vpop.f32.mrb[0].mxu0
        %595 = vmatprep.mubr.f32.mxu0 0.0
        %596 = vmatmul.mubr.f32.gmra.mrb[0].mxu0 %v451
        %v597 = vpop.f32.mrb[0].mxu0
        %v598 = vadd.f32 %v474, %v597
        %v599 = vpop.f32.mrb[0].mxu0
        %600 = vmatprep.mubr.f32.mxu0 0.0
        %601 = vmatmul.mubr.f32.gmra.mrb[0].mxu0 %v452
        %v602 = vpop.f32.mrb[0].mxu0
        %v603 = vadd.f32 %v474, %v602
        %v604 = vpop.f32.mrb[0].mxu0
        %605 = vdwg.mxu0
        %vm606 = vcmask 64512
        %607 = vst.msk [vmem:[%s226] sm:$0xff] %vm606, %v543
        %608 = vst.msk [vmem:[%s226 + $0x8] sm:$0xff] %vm606, %v548
        %609 = vst.msk [vmem:[%s226 + $0x10] sm:$0xff] %vm606, %v553
        %610 = vst.msk [vmem:[%s226 + $0x18] sm:$0xff] %vm606, %v558
        %611 = vst.msk [vmem:[%s226 + $0x20] sm:$0xff] %vm606, %v563
        %612 = vst.msk [vmem:[%s226 + $0x28] sm:$0xff] %vm606, %v568
        %613 = vst.msk [vmem:[%s226 + $0x30] sm:$0xff] %vm606, %v573
        %614 = vst.msk [vmem:[%s226 + $0x38] sm:$0xff] %vm606, %v578
        %615 = vst.msk [vmem:[%s226 + $0x40] sm:$0xff] %vm606, %v583
        %616 = vst.msk [vmem:[%s226 + $0x48] sm:$0xff] %vm606, %v588
        %617 = vst.msk [vmem:[%s226 + $0x50] sm:$0xff] %vm606, %v593
        %618 = vst.msk [vmem:[%s226 + $0x58] sm:$0xff] %vm606, %v598
        %619 = vst.msk [vmem:[%s226 + $0x60] sm:$0xff] %vm606, %v603
        %s620 = sand.u32 %s134, 1
        %s621 = sand.u32 %s134, 1
        %s622 = smul.addr %s621, 104
        %s623 = scalar_lea.vmem [#allocation2], %s622
        // Predicated region
        $region41: #{tpu_custom_call.1} parent=39 // pred_check
          %p624 = pneg %p144
        $region42: #{tpu_custom_call.1} parent=39 // pred_check_branch
          %626 = sbr.rel (%p624) target = $region44
        $region43: #{tpu_custom_call.1} parent=39 // pred_region
          %s627 = smul.u32 13, %s16
          %s628 = ssub.s32 25, %s627
          %p629 = scmp.lt.s32.totalorder %s628, 13
          %s630 = scalar_select %p629, %s628, 13
          %s631 = smul.u32 128, %s630
          %p632 = scmp.ne.s32.totalorder 0, %s631
          %s633 = smul.addr %s627, 8
          %s634 = scalar_lea.vmem %s5, %s633
          // Predicated region
          $region45: #{tpu_custom_call.1} parent=43 // pred_check
            %p635 = pneg %p632
          $region46: #{tpu_custom_call.1} parent=43 // pred_check_branch
            %637 = sbr.rel (%p635) target = $region48
          $region47: #{tpu_custom_call.1} parent=43 // pred_region
            // Predicated region
            $region49: #{tpu_custom_call.1} parent=47 // pred_check
              _
            $region50: #{tpu_custom_call.1} parent=47 // pred_check_branch
              %639 = sbr.rel (0) target = $region52
            $region51: #{tpu_custom_call.1} parent=47 // pred_region
              // Predicated region
              $region71: #{tpu_custom_call.1} parent=51 // pred_check
                _
              $region72: #{tpu_custom_call.1} parent=51 // pred_check_branch
                %713 = sbr.rel (0) target = $region74
              $region73: #{tpu_custom_call.1} parent=51 // pred_region
                %s714 = sdiv.u32.pop %s630, 13
                %s715 = srem.u32.pop %s630, 13
                // While loop
                $region75: #{tpu_custom_call.1} parent=73 // loop_pre_header
                  _
                $region76: #{tpu_custom_call.1} parent=73 // loop_header
                  %s717 = sphi 0, %s719
                  %p718 = scmp.ge.s32.totalorder %s717, %s714
                  %s722 = sphi 0, %s753
                  %s723 = sphi %s623, %s756
                  %s724 = sphi %s634, %s757
                $region77: #{tpu_custom_call.1} parent=73 // loop_header_branch
                  %721 = sbr.rel (%p718) target = $region81
                $region78: #{tpu_custom_call.1} parent=73 // loop_body
                  %v725 = vld [vmem:[%s723] sm:$0xff]
                  %726 = vst [vmem:[%s724] sm:$0xff] %v725
                  %v727 = vld [vmem:[%s723 + $0x8] sm:$0xff]
                  %728 = vst [vmem:[%s724 + $0x8] sm:$0xff] %v727
                  %v729 = vld [vmem:[%s723 + $0x10] sm:$0xff]
                  %730 = vst [vmem:[%s724 + $0x10] sm:$0xff] %v729
                  %v731 = vld [vmem:[%s723 + $0x18] sm:$0xff]
                  %732 = vst [vmem:[%s724 + $0x18] sm:$0xff] %v731
                  %v733 = vld [vmem:[%s723 + $0x20] sm:$0xff]
                  %734 = vst [vmem:[%s724 + $0x20] sm:$0xff] %v733
                  %v735 = vld [vmem:[%s723 + $0x28] sm:$0xff]
                  %736 = vst [vmem:[%s724 + $0x28] sm:$0xff] %v735
                  %v737 = vld [vmem:[%s723 + $0x30] sm:$0xff]
                  %738 = vst [vmem:[%s724 + $0x30] sm:$0xff] %v737
                  %v739 = vld [vmem:[%s723 + $0x38] sm:$0xff]
                  %740 = vst [vmem:[%s724 + $0x38] sm:$0xff] %v739
                  %v741 = vld [vmem:[%s723 + $0x40] sm:$0xff]
                  %742 = vst [vmem:[%s724 + $0x40] sm:$0xff] %v741
                  %v743 = vld [vmem:[%s723 + $0x48] sm:$0xff]
                  %744 = vst [vmem:[%s724 + $0x48] sm:$0xff] %v743
                  %v745 = vld [vmem:[%s723 + $0x50] sm:$0xff]
                  %746 = vst [vmem:[%s724 + $0x50] sm:$0xff] %v745
                  %v747 = vld [vmem:[%s723 + $0x58] sm:$0xff]
                  %748 = vst [vmem:[%s724 + $0x58] sm:$0xff] %v747
                  %v749 = vld [vmem:[%s723 + $0x60] sm:$0xff]
                  %750 = vst [vmem:[%s724 + $0x60] sm:$0xff] %v749
                  %s751 = sadd.s32 1, %s722
                  %p752 = scmp.ge.s32.totalorder %s751, %s714
                  %s753 = scalar_select %p752, 0, %s751
                  %s754 = smul.u32 %s753, 104
                  %s755 = smul.u32 %s753, 104
                  %s756 = scalar_lea.vmem %s623, %s754 [#allocation2]
                  %s757 = scalar_lea.vmem %s634, %s755
                $region79: #{tpu_custom_call.1} parent=73 // loop_footer
                  %s719 = sadd.s32 %s717, 1
                $region80: #{tpu_custom_call.1} parent=73 // loop_footer_branch
                  %716 = sbr.rel target = $region76
                $region81: #{tpu_custom_call.1} parent=73 // loop_exit
                  _
                %s758 = sdiv.u32.pop %s630, 13
                %s759 = srem.u32.pop %s630, 13
                %s760 = smul.u32 %s758, 13
                %s761 = smul.u32 8, %s760
                %s762 = scalar_lea.vmem %s623, %s761 [#allocation2]
                %s763 = smul.u32 8, %s760
                %s764 = scalar_lea.vmem %s634, %s763
                // While loop
                $region82: #{tpu_custom_call.1} parent=73 // loop_pre_header
                  _
                $region83: #{tpu_custom_call.1} parent=73 // loop_header
                  %s766 = sphi 0, %s768
                  %p767 = scmp.ge.s32.totalorder %s766, %s759
                  %s771 = sphi 0, %s778
                  %s772 = sphi %s762, %s781
                  %s773 = sphi %s764, %s782
                $region84: #{tpu_custom_call.1} parent=73 // loop_header_branch
                  %770 = sbr.rel (%p767) target = $region88
                $region85: #{tpu_custom_call.1} parent=73 // loop_body
                  %v774 = vld [vmem:[%s772] sm:$0xff]
                  %775 = vst [vmem:[%s773] sm:$0xff] %v774
                  %s776 = sadd.s32 1, %s771
                  %p777 = scmp.ge.s32.totalorder %s776, %s759
                  %s778 = scalar_select %p777, 0, %s776
                  %s779 = smul.u32 %s778, 8
                  %s780 = smul.u32 %s778, 8
                  %s781 = scalar_lea.vmem %s762, %s779 [#allocation2]
                  %s782 = scalar_lea.vmem %s764, %s780
                $region86: #{tpu_custom_call.1} parent=73 // loop_footer
                  %s768 = sadd.s32 %s766, 1
                $region87: #{tpu_custom_call.1} parent=73 // loop_footer_branch
                  %765 = sbr.rel target = $region83
                $region88: #{tpu_custom_call.1} parent=73 // loop_exit
                  _
              $region74: #{tpu_custom_call.1} parent=51 // pred_fallthru
                _
              // Predicated region
              $region89: #{tpu_custom_call.1} parent=51 // pred_check
                _
              $region90: #{tpu_custom_call.1} parent=51 // pred_check_branch
                %784 = sbr.rel target = $region92
              $region91: #{tpu_custom_call.1} parent=51 // pred_region
                _
              $region92: #{tpu_custom_call.1} parent=51 // pred_fallthru
                _
            $region52: #{tpu_custom_call.1} parent=47 // pred_fallthru
              _
            // Predicated region
            $region53: #{tpu_custom_call.1} parent=47 // pred_check
              _
            $region54: #{tpu_custom_call.1} parent=47 // pred_check_branch
              %641 = sbr.rel target = $region56
            $region55: #{tpu_custom_call.1} parent=47 // pred_region
              %s643 = sdiv.u32.pop %s630, 13
              %s644 = srem.u32.pop %s630, 13
              // While loop
              $region57: #{tpu_custom_call.1} parent=55 // loop_pre_header
                _
              $region58: #{tpu_custom_call.1} parent=55 // loop_header
                %s646 = sphi 0, %s648
                %p647 = scmp.ge.s32.totalorder %s646, %s643
                %s651 = sphi 0, %s682
                %s652 = sphi %s623, %s685
                %s653 = sphi %s634, %s686
              $region59: #{tpu_custom_call.1} parent=55 // loop_header_branch
                %650 = sbr.rel (%p647) target = $region63
              $region60: #{tpu_custom_call.1} parent=55 // loop_body
                %v654 = vld [vmem:[%s652] sm:$0xff]
                %655 = vst [vmem:[%s653] sm:$0xff] %v654
                %v656 = vld [vmem:[%s652 + $0x8] sm:$0xff]
                %657 = vst [vmem:[%s653 + $0x8] sm:$0xff] %v656
                %v658 = vld [vmem:[%s652 + $0x10] sm:$0xff]
                %659 = vst [vmem:[%s653 + $0x10] sm:$0xff] %v658
                %v660 = vld [vmem:[%s652 + $0x18] sm:$0xff]
                %661 = vst [vmem:[%s653 + $0x18] sm:$0xff] %v660
                %v662 = vld [vmem:[%s652 + $0x20] sm:$0xff]
                %663 = vst [vmem:[%s653 + $0x20] sm:$0xff] %v662
                %v664 = vld [vmem:[%s652 + $0x28] sm:$0xff]
                %665 = vst [vmem:[%s653 + $0x28] sm:$0xff] %v664
                %v666 = vld [vmem:[%s652 + $0x30] sm:$0xff]
                %667 = vst [vmem:[%s653 + $0x30] sm:$0xff] %v666
                %v668 = vld [vmem:[%s652 + $0x38] sm:$0xff]
                %669 = vst [vmem:[%s653 + $0x38] sm:$0xff] %v668
                %v670 = vld [vmem:[%s652 + $0x40] sm:$0xff]
                %671 = vst [vmem:[%s653 + $0x40] sm:$0xff] %v670
                %v672 = vld [vmem:[%s652 + $0x48] sm:$0xff]
                %673 = vst [vmem:[%s653 + $0x48] sm:$0xff] %v672
                %v674 = vld [vmem:[%s652 + $0x50] sm:$0xff]
                %675 = vst [vmem:[%s653 + $0x50] sm:$0xff] %v674
                %v676 = vld [vmem:[%s652 + $0x58] sm:$0xff]
                %677 = vst [vmem:[%s653 + $0x58] sm:$0xff] %v676
                %v678 = vld [vmem:[%s652 + $0x60] sm:$0xff]
                %679 = vst [vmem:[%s653 + $0x60] sm:$0xff] %v678
                %s680 = sadd.s32 1, %s651
                %p681 = scmp.ge.s32.totalorder %s680, %s643
                %s682 = scalar_select %p681, 0, %s680
                %s683 = smul.u32 %s682, 104
                %s684 = smul.u32 %s682, 104
                %s685 = scalar_lea.vmem %s623, %s683 [#allocation2]
                %s686 = scalar_lea.vmem %s634, %s684
              $region61: #{tpu_custom_call.1} parent=55 // loop_footer
                %s648 = sadd.s32 %s646, 1
              $region62: #{tpu_custom_call.1} parent=55 // loop_footer_branch
                %645 = sbr.rel target = $region58
              $region63: #{tpu_custom_call.1} parent=55 // loop_exit
                _
              %s687 = sdiv.u32.pop %s630, 13
              %s688 = srem.u32.pop %s630, 13
              %s689 = smul.u32 %s687, 13
              %s690 = smul.u32 8, %s689
              %s691 = scalar_lea.vmem %s623, %s690 [#allocation2]
              %s692 = smul.u32 8, %s689
              %s693 = scalar_lea.vmem %s634, %s692
              // While loop
              $region64: #{tpu_custom_call.1} parent=55 // loop_pre_header
                _
              $region65: #{tpu_custom_call.1} parent=55 // loop_header
                %s695 = sphi 0, %s697
                %p696 = scmp.ge.s32.totalorder %s695, %s688
                %s700 = sphi 0, %s707
                %s701 = sphi %s691, %s710
                %s702 = sphi %s693, %s711
              $region66: #{tpu_custom_call.1} parent=55 // loop_header_branch
                %699 = sbr.rel (%p696) target = $region70
              $region67: #{tpu_custom_call.1} parent=55 // loop_body
                %v703 = vld [vmem:[%s701] sm:$0xff]
                %704 = vst [vmem:[%s702] sm:$0xff] %v703
                %s705 = sadd.s32 1, %s700
                %p706 = scmp.ge.s32.totalorder %s705, %s688
                %s707 = scalar_select %p706, 0, %s705
                %s708 = smul.u32 %s707, 8
                %s709 = smul.u32 %s707, 8
                %s710 = scalar_lea.vmem %s691, %s708 [#allocation2]
                %s711 = scalar_lea.vmem %s693, %s709
              $region68: #{tpu_custom_call.1} parent=55 // loop_footer
                %s697 = sadd.s32 %s695, 1
              $region69: #{tpu_custom_call.1} parent=55 // loop_footer_branch
                %694 = sbr.rel target = $region65
              $region70: #{tpu_custom_call.1} parent=55 // loop_exit
                _
            $region56: #{tpu_custom_call.1} parent=47 // pred_fallthru
              _
          $region48: #{tpu_custom_call.1} parent=43 // pred_fallthru
            _
          %785 = vnop
        $region44: #{tpu_custom_call.1} parent=39 // pred_fallthru
          _
      $region40: #{tpu_custom_call.1} parent=5 // pred_fallthru
        _
      %p786 = scmp.le.s32.totalorder 2, %s11
      // Predicated region
      $region93: #{tpu_custom_call.1} parent=5 // pred_check
        %p787 = pneg %p786
      $region94: #{tpu_custom_call.1} parent=5 // pred_check_branch
        %789 = sbr.rel (%p787) target = $region96
      $region95: #{tpu_custom_call.1} parent=5 // pred_region
        %s790 = ssub.s32 %s11, 2
        // Predicated region
        $region97: #{tpu_custom_call.1} parent=95 // pred_check
          %p791 = pneg %p150
        $region98: #{tpu_custom_call.1} parent=95 // pred_check_branch
          %793 = sbr.rel (%p791) target = $region100
        $region99: #{tpu_custom_call.1} parent=95 // pred_region
          %s794 = sand.u32 %s135, 1
          %s795 = sand.u32 %s135, 1
          %s796 = smul.addr %s795, 104
          %s797 = scalar_lea.vmem [#allocation2], %s796
        $region100: #{tpu_custom_call.1} parent=95 // pred_fallthru
          _
      $region96: #{tpu_custom_call.1} parent=5 // pred_fallthru
        _
    $region6: #{tpu_custom_call.1} parent=1 // loop_footer
      %s15 = sadd.s32 1, %s11
    $region7: #{tpu_custom_call.1} parent=1 // loop_footer_branch
      %10 = sbr.rel target = $region3
    $region8: #{tpu_custom_call.1} parent=1 // loop_exit
      _

</llo_original>
